<compile_context>
chip_gen: v7x
topology: tpu7x:2x2x1
jax: 0.10.0
libtpu: 0.0.40
codegen_flags: <defaults>
</compile_context>

<pallas_src>
import functools

import jax
import jax.numpy as jnp
from jax import lax
from jax.experimental import pallas as pl
from jax.experimental.pallas import tpu as pltpu


def _round_up(x, m):
    return (x + m - 1) // m * m


# ---------------------------------------------------------------------------
# Fused-gather kernel: z^T resident in VMEM; gather via one-hot matmul (MXU);
# edges on lanes -> lane-dense output row.
# ---------------------------------------------------------------------------
def _fused_dot_edge_kernel(zt_ref, src_ref, dst_ref, o_ref, *, apply_sigmoid):
    # zt_ref : (D, N)   node embeddings (transposed), resident across the grid
    # src_ref: (1, TE)  int32 source node ids for this edge tile
    # dst_ref: (1, TE)  int32 destination node ids
    # o_ref  : (1, TE)  per-edge scores (lane-dense)
    n_nodes = zt_ref.shape[1]
    tile_e = src_ref.shape[1]

    src_ids = src_ref[...]                                    # (1, TE) int32
    dst_ids = dst_ref[...]                                    # (1, TE) int32

    node_iota = lax.broadcasted_iota(jnp.int32, (n_nodes, tile_e), 0)
    oh_src = (node_iota == src_ids).astype(zt_ref.dtype)      # (N, TE)
    oh_dst = (node_iota == dst_ids).astype(zt_ref.dtype)      # (N, TE)

    # Gather on the MXU (otherwise idle in this kernel): (D, N) @ (N, TE)
    zs = jnp.dot(zt_ref[...], oh_src, preferred_element_type=jnp.float32)
    zd = jnp.dot(zt_ref[...], oh_dst, preferred_element_type=jnp.float32)

    s = jnp.sum(zs * zd, axis=0, keepdims=True)               # (1, TE)
    if apply_sigmoid:
        s = jax.nn.sigmoid(s)                                 # EUP
    o_ref[...] = s.astype(o_ref.dtype)


# ---------------------------------------------------------------------------
# Fallback kernel for very large z: embeddings gathered by XLA, kernel does the
# elementwise product + reduce with large edge tiles.
# ---------------------------------------------------------------------------
def _gathered_dot_edge_kernel(zs_ref, zd_ref, o_ref, *, apply_sigmoid):
    prod = zs_ref[...].astype(jnp.float32) * zd_ref[...].astype(jnp.float32)
    s = jnp.sum(prod, axis=-1, keepdims=True)                 # (TE, 1)
    if apply_sigmoid:
        s = jax.nn.sigmoid(s)
    o_ref[...] = s.astype(o_ref.dtype)


def dot_edge_decoder(z, edge, sigmoid=True, *, tile_e=1024):
    """Pallas equivalent of DotEdgeDecoder.forward(z, edge, sigmoid)."""
    N, D = z.shape
    E = edge.shape[1]
    src_ids = edge[0].astype(jnp.int32)
    dst_ids = edge[1].astype(jnp.int32)
    itemsize = jnp.dtype(z.dtype).itemsize

    # Fused path needs z resident in VMEM and a cheap one-hot gather.
    z_bytes = N * D * itemsize
    use_fused = (z_bytes <= (4 << 20)) and (N <= 2048)

    if use_fused:
        # Lane-dense tile (multiple of 128), capped so the per-tile one-hot /
        # intermediate working set stays well under every generation's scoped
        # VMEM default (16 MiB v5e, 32 MiB v6e/v7x).
        te = max(128, min(_round_up(tile_e, 128), _round_up(E, 128)))
        while te > 128 and (2 * N + 3 * D + 8) * te * 4 > (6 << 20):
            te //= 2

        E_pad = _round_up(E, te)
        if E_pad != E:
            # Pad only the tiny int32 id vectors (never (E, D) embeddings);
            # padded ids point at node 0 and their scores are sliced off below.
            src_ids = jnp.pad(src_ids, (0, E_pad - E))
            dst_ids = jnp.pad(dst_ids, (0, E_pad - E))
        src_ids = src_ids.reshape(1, E_pad)
        dst_ids = dst_ids.reshape(1, E_pad)
        zt = z.T                                              # (D, N), tiny

        grid = (E_pad // te,)
        kernel = functools.partial(_fused_dot_edge_kernel,
                                   apply_sigmoid=sigmoid)
        cost = pl.CostEstimate(
            flops=2 * 2 * E_pad * N * D + 2 * E_pad * D,
            transcendentals=E_pad if sigmoid else 0,
            bytes_accessed=z_bytes + 2 * E_pad * 4 + E_pad * 4,
        )

        out = pl.pallas_call(
            kernel,
            out_shape=jax.ShapeDtypeStruct((1, E_pad), jnp.float32),
            grid_spec=pltpu.PrefetchScalarGridSpec(
                num_scalar_prefetch=0,
                grid=grid,
                in_specs=[
                    pl.BlockSpec((D, N), lambda i: (0, 0)),   # z^T resident
                    pl.BlockSpec((1, te), lambda i: (0, i)),  # src ids
                    pl.BlockSpec((1, te), lambda i: (0, i)),  # dst ids
                ],
                out_specs=pl.BlockSpec((1, te), lambda i: (0, i)),
            ),
            compiler_params=pltpu.CompilerParams(
                dimension_semantics=("parallel",),
            ),
            cost_estimate=cost,
        )(zt, src_ids, dst_ids)
        return out[0, :E]

    # -------- fallback: z too large to keep resident in VMEM --------
    # TODO(synk): for very large graphs a manual DMA row-gather
    # (memory_space=pl.ANY + pltpu.make_async_copy double-buffering) would
    # avoid materializing the (E, D) gathers in HBM.
    src = jnp.take(z, edge[0], axis=0)                        # (E, D)
    dst = jnp.take(z, edge[1], axis=0)                        # (E, D)
    sublane_mult = {4: 8, 2: 16, 1: 32}.get(itemsize, 8)
    rows = max(sublane_mult, min(512, _round_up(E, sublane_mult)))
    grid = (pl.cdiv(E, rows),)
    kernel = functools.partial(_gathered_dot_edge_kernel, apply_sigmoid=sigmoid)
    out = pl.pallas_call(
        kernel,
        out_shape=jax.ShapeDtypeStruct((E, 1), jnp.float32),
        grid_spec=pltpu.PrefetchScalarGridSpec(
            num_scalar_prefetch=0,
            grid=grid,
            in_specs=[
                pl.BlockSpec((rows, D), lambda i: (i, 0)),
                pl.BlockSpec((rows, D), lambda i: (i, 0)),
            ],
            out_specs=pl.BlockSpec((rows, 1), lambda i: (i, 0)),
        ),
        compiler_params=pltpu.CompilerParams(
            dimension_semantics=("parallel",),
        ),
    )(src, dst)
    return out[:E, 0]


if __name__ == "__main__":
    key = jax.random.PRNGKey(0)
    k_z, k_src, k_dst = jax.random.split(key, 3)

    N, D, E = 16, 32, 8                                       # small shapes
    z = jax.random.normal(k_z, (N, D), dtype=jnp.float32)
    edge = jnp.stack(
        [
            jax.random.randint(k_src, (E,), 0, N, dtype=jnp.int32),
            jax.random.randint(k_dst, (E,), 0, N, dtype=jnp.int32),
        ],
        axis=0,
    )                                                         # (2, E)

    out = jax.block_until_ready(dot_edge_decoder(z, edge, sigmoid=True))
    ref = jax.nn.sigmoid(jnp.sum(z[edge[0]] * z[edge[1]], axis=-1))
    assert out.shape == (E,)
    assert jnp.allclose(out, ref, atol=1e-5, rtol=1e-5)

    out_raw = jax.block_until_ready(dot_edge_decoder(z, edge, sigmoid=False))
    ref_raw = jnp.sum(z[edge[0]] * z[edge[1]], axis=-1)
    assert jnp.allclose(out_raw, ref_raw, atol=1e-5, rtol=1e-5)

    # multi-tile path: several lane-dense blocks plus a padded tail
    E2 = 300
    k_s2, k_d2 = jax.random.split(jax.random.PRNGKey(1))
    edge2 = jnp.stack(
        [
            jax.random.randint(k_s2, (E2,), 0, N, dtype=jnp.int32),
            jax.random.randint(k_d2, (E2,), 0, N, dtype=jnp.int32),
        ],
        axis=0,
    )
    out2 = jax.block_until_ready(
        dot_edge_decoder(z, edge2, sigmoid=True, tile_e=128)
    )
    ref2 = jax.nn.sigmoid(jnp.sum(z[edge2[0]] * z[edge2[1]], axis=-1))
    assert out2.shape == (E2,)
    assert jnp.allclose(out2, ref2, atol=1e-5, rtol=1e-5)

    print("KERNEL_OK")
</pallas_src>

<mosaic_0001>
module attributes {stable_mosaic.version = 11 : i64} {
  func.func @_fused_dot_edge_kernel(%arg0: i32, %arg1: memref<32x16xf32, #tpu.memory_space<vmem>>, %arg2: memref<1x128xi32, #tpu.memory_space<vmem>>, %arg3: memref<1x128xi32, #tpu.memory_space<vmem>>, %arg4: memref<1x128xf32, #tpu.memory_space<vmem>>) attributes {dimension_semantics = [#tpu.dimension_semantics<parallel>], iteration_bounds = array<i64: 1>, scalar_prefetch = 0 : i64, scratch_operands = 0 : i64, tpu.core_type = #tpu.core_type<tc>, window_params = [{pipeline_mode = #tpu.pipeline_mode<synchronous>, transform_indices = @transform_0, window_bounds = array<i64: 32, 16>}, {transform_indices = @transform_1, window_bounds = array<i64: 1, 128>}, {transform_indices = @transform_2, window_bounds = array<i64: 1, 128>}, {transform_indices = @transform_3, window_bounds = array<i64: 1, 128>}]} {
    %c0 = arith.constant 0 : index
    %c0_0 = arith.constant 0 : index
    %0 = vector.load %arg2[%c0, %c0_0] : memref<1x128xi32, #tpu.memory_space<vmem>>, vector<1x128xi32>
    %c0_1 = arith.constant 0 : index
    %c0_2 = arith.constant 0 : index
    %1 = vector.load %arg3[%c0_1, %c0_2] : memref<1x128xi32, #tpu.memory_space<vmem>>, vector<1x128xi32>
    %2 = tpu.iota {dimensions = array<i32: 0>} : vector<16x128xi32>
    %3 = vector.broadcast %0 : vector<1x128xi32> to vector<16x128xi32>
    %4 = arith.cmpi eq, %2, %3 : vector<16x128xi32>
    %5 = arith.extui %4 : vector<16x128xi1> to vector<16x128xi32>
    %6 = arith.sitofp %5 : vector<16x128xi32> to vector<16x128xf32>
    %7 = vector.broadcast %1 : vector<1x128xi32> to vector<16x128xi32>
    %8 = arith.cmpi eq, %2, %7 : vector<16x128xi32>
    %9 = arith.extui %8 : vector<16x128xi1> to vector<16x128xi32>
    %10 = arith.sitofp %9 : vector<16x128xi32> to vector<16x128xf32>
    %c0_3 = arith.constant 0 : index
    %c0_4 = arith.constant 0 : index
    %11 = vector.load %arg1[%c0_3, %c0_4] : memref<32x16xf32, #tpu.memory_space<vmem>>, vector<32x16xf32>
    %cst = arith.constant dense<0.000000e+00> : vector<32x128xf32>
    %12 = tpu.matmul %11, %6, %cst {dimension_numbers = #tpu.dot_dimension_numbers<[1], [0], [0], [1], [0, 0, 1, 1], [], []>} : vector<32x16xf32>, vector<16x128xf32>, vector<32x128xf32> -> vector<32x128xf32>
    %c0_5 = arith.constant 0 : index
    %c0_6 = arith.constant 0 : index
    %13 = vector.load %arg1[%c0_5, %c0_6] : memref<32x16xf32, #tpu.memory_space<vmem>>, vector<32x16xf32>
    %cst_7 = arith.constant dense<0.000000e+00> : vector<32x128xf32>
    %14 = tpu.matmul %13, %10, %cst_7 {dimension_numbers = #tpu.dot_dimension_numbers<[1], [0], [0], [1], [0, 0, 1, 1], [], []>} : vector<32x16xf32>, vector<16x128xf32>, vector<32x128xf32> -> vector<32x128xf32>
    %15 = arith.mulf %12, %14 : vector<32x128xf32>
    %cst_8 = arith.constant dense<0.000000e+00> : vector<128xf32>
    %16 = vector.multi_reduction <add>, %15, %cst_8 [0] : vector<32x128xf32> to vector<128xf32>
    %17 = vector.shape_cast %16 : vector<128xf32> to vector<1x128xf32>
    %18 = arith.negf %17 : vector<1x128xf32>
    %19 = math.exp %18 : vector<1x128xf32>
    %cst_9 = arith.constant 1.000000e+00 : f32
    %20 = vector.broadcast %cst_9 : f32 to vector<1x128xf32>
    %21 = arith.addf %20, %19 : vector<1x128xf32>
    %22 = arith.divf %20, %21 : vector<1x128xf32>
    %c0_10 = arith.constant 0 : index
    %c0_11 = arith.constant 0 : index
    %23 = vector.load %arg4[%c0_10, %c0_11] : memref<1x128xf32, #tpu.memory_space<vmem>>, vector<1x128xf32>
    tpu.vector_store %arg4[%c0_10, %c0_11], %22 {strides = array<i32>} : memref<1x128xf32, #tpu.memory_space<vmem>>, vector<1x128xf32>,
    return
  }
  func.func @transform_0(%arg0: i32) -> (i32, i32) {
    %c0_i32 = arith.constant 0 : i32
    %c0_i32_0 = arith.constant 0 : i32
    %c0_i32_1 = arith.constant 0 : i32
    return %c0_i32, %c0_i32_0 : i32, i32
  }
  func.func @transform_1(%arg0: i32) -> (i32, i32) {
    %c0_i32 = arith.constant 0 : i32
    %c0_i32_0 = arith.constant 0 : i32
    return %c0_i32, %arg0 : i32, i32
  }
  func.func @transform_2(%arg0: i32) -> (i32, i32) {
    %c0_i32 = arith.constant 0 : i32
    %c0_i32_0 = arith.constant 0 : i32
    return %c0_i32, %arg0 : i32, i32
  }
  func.func @transform_3(%arg0: i32) -> (i32, i32) {
    %c0_i32 = arith.constant 0 : i32
    %c0_i32_0 = arith.constant 0 : i32
    return %c0_i32, %arg0 : i32, i32
  }
}

</mosaic_0001>

<llo_original>
// kernel: tpu_custom_call.1
$region0: #{tpu_custom_call.1}
  #allocation0 [shape = 'u32[]', space=smem, size = 0x4, offset = 0x4, fixed_abs, tag = 'smem constant byte address 0x4 - core index']
  #allocation1 [shape = 'u32[144,128]{1,0:T(1,128)}', space=vmem, size = 0x12000, scoped, tag = 'internal scratch']
  %s0 = inlined_call_operand.vmem [shape: f32[32,16], index: 0, kind: input, shape index: {}]
  %s1 = inlined_call_operand.vmem [shape: s32[1,128], index: 1, kind: input, shape index: {}]
  %s2 = inlined_call_operand.vmem [shape: s32[1,128], index: 2, kind: input, shape index: {}]
  %s3 = inlined_call_operand.hbm [shape: f32[1,128], index: 3, kind: output, shape index: {}]
  %s4 = sld [smem:[#allocation0]]
  $region22: #{tpu_custom_call.1} parent=0
    _
  %s6 = ssub.s32 1, %s4
  %s7 = scalar_select 0, %s6, %s4
  $region1: #{tpu_custom_call.1} parent=0
    #allocation2 [shape = 'u8[512]{0}', space=vmem, size = 0x400, scoped, tag = 'output window, operand 0, single buffered']
    #allocation3 [shape = 's32[1]{0}', space=sflag, size = 0x4, scoped, tag = 'scoped memory for tpu_custom_call.1']
    %8 = vsyncpa [#allocation3], 0
    // Predicated region
    $region2: #{tpu_custom_call.1} parent=1 // pred_check
      _
    $region3: #{tpu_custom_call.1} parent=1 // pred_check_branch
      %10 = sbr.rel (0) target = $region5
    $region4: #{tpu_custom_call.1} parent=1 // pred_region
      _
    $region5: #{tpu_custom_call.1} parent=1 // pred_fallthru
      _
    // Predicated region
    $region6: #{tpu_custom_call.1} parent=1 // pred_check
      _
    $region7: #{tpu_custom_call.1} parent=1 // pred_check_branch
      %12 = sbr.rel (0) target = $region9
    $region8: #{tpu_custom_call.1} parent=1 // pred_region
      _
    $region9: #{tpu_custom_call.1} parent=1 // pred_fallthru
      _
    // Predicated region
    $region10: #{tpu_custom_call.1} parent=1 // pred_check
      _
    $region11: #{tpu_custom_call.1} parent=1 // pred_check_branch
      %14 = sbr.rel (0) target = $region13
    $region12: #{tpu_custom_call.1} parent=1 // pred_region
      _
    $region13: #{tpu_custom_call.1} parent=1 // pred_fallthru
      _
    %v15 = vld [vmem:[%s1] sm:$0x1]
    %v16 = vld [vmem:[%s2] sm:$0x1]
    %v17 = vlaneseq
    %v18 = vshrl.u32 %v17, 7
    %v19 = vadd.s32 %v18, 8
    %v20 = vlaneseq
    %v21 = vshrl.u32 %v20, 7
    %v22 = vsub.s32 0, %v21
    %v23 = vrot.slane %v15, %v22
    %vm24 = vcmp.eq.s32.totalorder %v18, %v23
    %vm25 = vcmp.eq.s32.totalorder %v19, %v23
    %v26 = vsel %vm24, 1, 0
    %v27 = vsel %vm25, 1, 0
    %v28 = vcvt.s32.f32 %v26
    %v29 = vcvt.s32.f32 %v27
    %v30 = vlaneseq
    %v31 = vshrl.u32 %v30, 7
    %v32 = vsub.s32 0, %v31
    %v33 = vrot.slane %v16, %v32
    %vm34 = vcmp.eq.s32.totalorder %v18, %v33
    %vm35 = vcmp.eq.s32.totalorder %v19, %v33
    %v36 = vsel %vm34, 1, 0
    %v37 = vsel %vm35, 1, 0
    %v38 = vcvt.s32.f32 %v36
    %v39 = vcvt.s32.f32 %v37
    %v40 = vld [vmem:[%s0] sm:$0xff]
    %v41 = vld [vmem:[%s0 + $0x8] sm:$0xff]
    %v42 = vld [vmem:[%s0 + $0x10] sm:$0xff]
    %v43 = vld [vmem:[%s0 + $0x18] sm:$0xff]
    %vm44 = vcmask 130048
    %v46 = vsel %vm44, %v40, 0
    %v49 = vsel %vm44, %v41, 0
    %v52 = vsel %vm44, %v42, 0
    %v55 = vsel %vm44, %v43, 0
    %57 = vmatprep.subr.mxu0 0.0
    %58 = vmatpush1.msra.mxu0 %v28
    %59 = vmatprep.subr.mxu0 0.0
    %60 = vmatpush1.msra.mxu0 %v29
    %61 = vmatprep.subr.mxu0 0.0
    %62 = vmatpush1.msra.mxu0 0.0
    %63 = vmatprep.subr.mxu0 0.0
    %64 = vmatpush1.msra.mxu0 0.0
    %65 = vmatprep.subr.mxu0 0.0
    %66 = vmatpush1.msra.mxu0 0.0
    %67 = vmatprep.subr.mxu0 0.0
    %68 = vmatpush1.msra.mxu0 0.0
    %69 = vmatprep.subr.mxu0 0.0
    %70 = vmatpush1.msra.mxu0 0.0
    %71 = vmatprep.subr.mxu0 0.0
    %72 = vmatpush1.msra.mxu0 0.0
    %73 = vmatprep.subr.mxu0 0.0
    %74 = vmatpush1.msra.mxu0 0.0
    %75 = vmatprep.subr.mxu0 0.0
    %76 = vmatpush1.msra.mxu0 0.0
    %77 = vmatprep.subr.mxu0 0.0
    %78 = vmatpush1.msra.mxu0 0.0
    %79 = vmatprep.subr.mxu0 0.0
    %80 = vmatpush1.msra.mxu0 0.0
    %81 = vmatprep.subr.mxu0 0.0
    %82 = vmatpush1.msra.mxu0 0.0
    %83 = vmatprep.subr.mxu0 0.0
    %84 = vmatpush1.msra.mxu0 0.0
    %85 = vmatprep.subr.mxu0 0.0
    %86 = vmatpush1.msra.mxu0 0.0
    %87 = vmatprep.subr.mxu0 0.0
    %88 = vmatpush1.msra.mxu0 0.0
    %89 = vmatprep.subr.mxu0 0.0
    %90 = vmatpush1.msra.mxu0 0.0
    %91 = vmatprep.subr.mxu0 0.0
    %92 = vmatpush1.msra.mxu0 0.0
    %93 = vmatprep.subr.mxu0 0.0
    %94 = vmatpush1.msra.mxu0 0.0
    %95 = vmatprep.subr.mxu0 0.0
    %96 = vmatpush1.msra.mxu0 0.0
    %97 = vmatprep.subr.mxu0 0.0
    %98 = vmatpush1.msra.mxu0 0.0
    %99 = vmatprep.subr.mxu0 0.0
    %100 = vmatpush1.msra.mxu0 0.0
    %101 = vmatprep.subr.mxu0 0.0
    %102 = vmatpush1.msra.mxu0 0.0
    %103 = vmatprep.subr.mxu0 0.0
    %104 = vmatpush1.msra.mxu0 0.0
    %105 = vmatprep.subr.mxu0 0.0
    %106 = vmatpush1.msra.mxu0 0.0
    %107 = vmatprep.subr.mxu0 0.0
    %108 = vmatpush1.msra.mxu0 0.0
    %109 = vmatprep.subr.mxu0 0.0
    %110 = vmatpush1.msra.mxu0 0.0
    %111 = vmatprep.subr.mxu0 0.0
    %112 = vmatpush1.msra.mxu0 0.0
    %113 = vmatprep.subr.mxu0 0.0
    %114 = vmatpush1.msra.mxu0 0.0
    %115 = vmatprep.subr.mxu0 0.0
    %116 = vmatpush1.msra.mxu0 0.0
    %117 = vmatprep.subr.mxu0 0.0
    %118 = vmatpush1.msra.mxu0 0.0
    %119 = vmatprep.subr.mxu0 0.0
    %120 = vmatpush1.msra.mxu0 0.0
    %121 = vmatprep.mubr.f32.mxu0 0.0
    %122 = vmatmul.mubr.f32.gmra.mrb[0].mxu0 %v46
    %v123 = vpop.f32.mrb[0].mxu0
    %v124 = vadd.f32 0.0, %v123
    %v125 = vpop.f32.mrb[0].mxu0
    %126 = vmatprep.mubr.f32.mxu0 0.0
    %127 = vmatmul.mubr.f32.gmra.mrb[0].mxu0 %v49
    %v128 = vpop.f32.mrb[0].mxu0
    %v129 = vadd.f32 0.0, %v128
    %v130 = vpop.f32.mrb[0].mxu0
    %131 = vmatprep.mubr.f32.mxu0 0.0
    %132 = vmatmul.mubr.f32.gmra.mrb[0].mxu0 %v52
    %v133 = vpop.f32.mrb[0].mxu0
    %v134 = vadd.f32 0.0, %v133
    %v135 = vpop.f32.mrb[0].mxu0
    %136 = vmatprep.mubr.f32.mxu0 0.0
    %137 = vmatmul.mubr.f32.gmra.mrb[0].mxu0 %v55
    %v138 = vpop.f32.mrb[0].mxu0
    %v139 = vadd.f32 0.0, %v138
    %v140 = vpop.f32.mrb[0].mxu0
    %141 = vdwg.mxu0
    %142 = vmatprep.subr.mxu0 0.0
    %143 = vmatpush1.msra.mxu0 %v38
    %144 = vmatprep.subr.mxu0 0.0
    %145 = vmatpush1.msra.mxu0 %v39
    %146 = vmatprep.subr.mxu0 0.0
    %147 = vmatpush1.msra.mxu0 0.0
    %148 = vmatprep.subr.mxu0 0.0
    %149 = vmatpush1.msra.mxu0 0.0
    %150 = vmatprep.subr.mxu0 0.0
    %151 = vmatpush1.msra.mxu0 0.0
    %152 = vmatprep.subr.mxu0 0.0
    %153 = vmatpush1.msra.mxu0 0.0
    %154 = vmatprep.subr.mxu0 0.0
    %155 = vmatpush1.msra.mxu0 0.0
    %156 = vmatprep.subr.mxu0 0.0
    %157 = vmatpush1.msra.mxu0 0.0
    %158 = vmatprep.subr.mxu0 0.0
    %159 = vmatpush1.msra.mxu0 0.0
    %160 = vmatprep.subr.mxu0 0.0
    %161 = vmatpush1.msra.mxu0 0.0
    %162 = vmatprep.subr.mxu0 0.0
    %163 = vmatpush1.msra.mxu0 0.0
    %164 = vmatprep.subr.mxu0 0.0
    %165 = vmatpush1.msra.mxu0 0.0
    %166 = vmatprep.subr.mxu0 0.0
    %167 = vmatpush1.msra.mxu0 0.0
    %168 = vmatprep.subr.mxu0 0.0
    %169 = vmatpush1.msra.mxu0 0.0
    %170 = vmatprep.subr.mxu0 0.0
    %171 = vmatpush1.msra.mxu0 0.0
    %172 = vmatprep.subr.mxu0 0.0
    %173 = vmatpush1.msra.mxu0 0.0
    %174 = vmatprep.subr.mxu0 0.0
    %175 = vmatpush1.msra.mxu0 0.0
    %176 = vmatprep.subr.mxu0 0.0
    %177 = vmatpush1.msra.mxu0 0.0
    %178 = vmatprep.subr.mxu0 0.0
    %179 = vmatpush1.msra.mxu0 0.0
    %180 = vmatprep.subr.mxu0 0.0
    %181 = vmatpush1.msra.mxu0 0.0
    %182 = vmatprep.subr.mxu0 0.0
    %183 = vmatpush1.msra.mxu0 0.0
    %184 = vmatprep.subr.mxu0 0.0
    %185 = vmatpush1.msra.mxu0 0.0
    %186 = vmatprep.subr.mxu0 0.0
    %187 = vmatpush1.msra.mxu0 0.0
    %188 = vmatprep.subr.mxu0 0.0
    %189 = vmatpush1.msra.mxu0 0.0
    %190 = vmatprep.subr.mxu0 0.0
    %191 = vmatpush1.msra.mxu0 0.0
    %192 = vmatprep.subr.mxu0 0.0
    %193 = vmatpush1.msra.mxu0 0.0
    %194 = vmatprep.subr.mxu0 0.0
    %195 = vmatpush1.msra.mxu0 0.0
    %196 = vmatprep.subr.mxu0 0.0
    %197 = vmatpush1.msra.mxu0 0.0
    %198 = vmatprep.subr.mxu0 0.0
    %199 = vmatpush1.msra.mxu0 0.0
    %200 = vmatprep.subr.mxu0 0.0
    %201 = vmatpush1.msra.mxu0 0.0
    %202 = vmatprep.subr.mxu0 0.0
    %203 = vmatpush1.msra.mxu0 0.0
    %204 = vmatprep.subr.mxu0 0.0
    %205 = vmatpush1.msra.mxu0 0.0
    %206 = vmatprep.mubr.f32.mxu0 0.0
    %207 = vmatmul.mubr.f32.gmra.mrb[0].mxu0 %v46
    %v208 = vpop.f32.mrb[0].mxu0
    %v209 = vadd.f32 0.0, %v208
    %v210 = vpop.f32.mrb[0].mxu0
    %211 = vmatprep.mubr.f32.mxu0 0.0
    %212 = vmatmul.mubr.f32.gmra.mrb[0].mxu0 %v49
    %v213 = vpop.f32.mrb[0].mxu0
    %v214 = vadd.f32 0.0, %v213
    %v215 = vpop.f32.mrb[0].mxu0
    %216 = vmatprep.mubr.f32.mxu0 0.0
    %217 = vmatmul.mubr.f32.gmra.mrb[0].mxu0 %v52
    %v218 = vpop.f32.mrb[0].mxu0
    %v219 = vadd.f32 0.0, %v218
    %v220 = vpop.f32.mrb[0].mxu0
    %221 = vmatprep.mubr.f32.mxu0 0.0
    %222 = vmatmul.mubr.f32.gmra.mrb[0].mxu0 %v55
    %v223 = vpop.f32.mrb[0].mxu0
    %v224 = vadd.f32 0.0, %v223
    %v225 = vpop.f32.mrb[0].mxu0
    %226 = vdwg.mxu0
    %v227 = vmul.f32 %v124, %v209
    %v228 = vmul.f32 %v129, %v214
    %v229 = vmul.f32 %v134, %v219
    %v230 = vmul.f32 %v139, %v224
    %v231 = vadd.f32 %v227, %v228
    %v232 = vadd.f32 %v231, %v229
    %v233 = vadd.f32 %v232, %v230
    %v234 = vrot.slane %v233, 4
    %v235 = vadd.f32 %v233, %v234
    %v236 = vrot.slane %v235, 2
    %v237 = vadd.f32 %v235, %v236
    %v238 = vrot.slane %v237, 1
    %v239 = vadd.f32 %v237, %v238
    %v240 = vxor.u32 %v239, 2147483648
    %v241 = vmul.f32 %v240, 1.442695
    %v242 = vpow.pop %v241
    %v243 = vadd.f32 %v242, 1.0
    %v244 = vrcp.pop %v243
    %v245 = vmul.f32 1.0, %v244
    %246 = vst [vmem:[#allocation2] sm:$0x1] %v245
    // Predicated region
    $region14: #{tpu_custom_call.1} parent=1 // pred_check
      _
    $region15: #{tpu_custom_call.1} parent=1 // pred_check_branch
      %248 = sbr.rel (0) target = $region17
    $region16: #{tpu_custom_call.1} parent=1 // pred_region
      %s250 = ssub.s32 16, 16
      %251 = vsyncadd [#allocation3], %s250
      %s253 = sshll.u32 [#allocation2], 4
      %s254 = int_to_ptr.vmem [resolvable:$true] %s253
      %256 = dma.vmem_to_hbm [thread:$0]  %s254, 16, %s3, [#allocation3]
    $region17: #{tpu_custom_call.1} parent=1 // pred_fallthru
      _
    // Predicated region
    $region18: #{tpu_custom_call.1} parent=1 // pred_check
      _
    $region19: #{tpu_custom_call.1} parent=1 // pred_check_branch
      %258 = sbr.rel (0) target = $region21
    $region20: #{tpu_custom_call.1} parent=1 // pred_region
      %259 = dma.done [#allocation3], 16
    $region21: #{tpu_custom_call.1} parent=1 // pred_fallthru
      _
    %260 = vsyncpa [#allocation3], 1

</llo_original>
